<compile_context>
chip_gen: v7x
topology: tpu7x:2x2x1
jax: 0.10.0
libtpu: 0.0.40
codegen_flags: <defaults>
</compile_context>

<pallas_src>
import functools

import numpy as np
import jax
import jax.numpy as jnp
from jax import lax
from jax.experimental import pallas as pl
from jax.experimental.pallas import tpu as pltpu


# ----------------------------------------------------------------------------
# Hardware-aware VMEM budget
# ----------------------------------------------------------------------------

@functools.lru_cache(maxsize=None)
def _vmem_limit_bytes():
    """Scoped-VMEM limit derived from the chip (v7x: 64 MiB, v5e/v6e: 128 MiB)."""
    cap = None
    try:
        info = pltpu.get_tpu_info()
        cap = getattr(info, "vmem_capacity_bytes", None)
    except Exception:
        cap = None
    if not cap:
        cap = 64 * 1024 * 1024            # conservative (v7x-sized) default
    if cap <= 64 * 1024 * 1024:
        return 40 * 1024 * 1024           # leave headroom under v7x's 64 MiB
    return 96 * 1024 * 1024               # v5e / v6e (128 MiB physical)


def _compiler_params(semantics):
    return pltpu.CompilerParams(dimension_semantics=semantics,
                                vmem_limit_bytes=_vmem_limit_bytes())


def _spatial_tile_cap():
    # Lane-tile cap for the channel-mix kernels (always a multiple of 128).
    return 65536 if _vmem_limit_bytes() > 48 * 1024 * 1024 else 32768


# ----------------------------------------------------------------------------
# 2x2 average pooling == F.interpolate(scale_factor=0.5, mode='bilinear')
# ----------------------------------------------------------------------------

def _pool_w_matrix(wt):
    # Tile-local 2-tap contraction (0.5, 0.5) along W.
    m = np.zeros((wt, wt // 2), np.float32)
    j = np.arange(wt // 2)
    m[2 * j, j] = 0.5
    m[2 * j + 1, j] = 0.5
    return m


def _pool_h_matrix(h):
    m = np.zeros((h // 2, h), np.float32)
    i = np.arange(h // 2)
    m[i, 2 * i] = 0.5
    m[i, 2 * i + 1] = 0.5
    return m


def _pool2x2_kernel(x_ref, bw_ref, o_ref, *, w_total, wt, mask_w):
    # H direction: VPU sublane-pair average (no interpolation matrix at all).
    # W direction: tile-local 2-tap contraction (contraction length == wt).
    x = x_ref[0]                                             # (H, wt)
    if mask_w:
        # Partial last lane tile: zero out-of-range columns so garbage cannot
        # leak through the 2-tap contraction (the corresponding output columns
        # are masked on store anyway).
        valid = w_total - pl.program_id(1) * wt
        col = lax.broadcasted_iota(jnp.int32, x.shape, 1)
        x = jnp.where(col < valid, x, 0.0)
    h = x.shape[0]
    x3 = x.reshape(h // 2, 2, wt)
    xh = ((x3[:, 0, :] + x3[:, 1, :]) * 0.5).astype(jnp.bfloat16)   # (H/2, wt)
    y = jnp.dot(xh, bw_ref[...], preferred_element_type=jnp.float32)  # (H/2, wt/2)
    o_ref[0] = y.astype(o_ref.dtype)


def _pool2x2_kernel_small(x_ref, ah_ref, bw_ref, o_ref):
    # Fallback for small / non-vreg-aligned widths: both directions as tiny
    # 2-tap contractions (contraction lengths are small here, so this is cheap).
    x = x_ref[0].astype(jnp.bfloat16)                        # (H, W)
    t = jnp.dot(x, bw_ref[...], preferred_element_type=jnp.float32)          # (H, W/2)
    y = jnp.dot(ah_ref[...], t.astype(jnp.bfloat16),
                preferred_element_type=jnp.float32)                           # (H/2, W/2)
    o_ref[0] = y.astype(o_ref.dtype)


def pool2x2(x, out_dtype=jnp.bfloat16):
    """F.interpolate(x, scale_factor=0.5, mode='bilinear', align_corners=False).

    Exact 2x2 average pooling (the bilinear taps are (0.5, 0.5) for an exact
    0.5 factor).  Intermediates are written back as bf16.
    """
    n, c, h, w = x.shape
    assert h % 2 == 0 and w % 2 == 0, (h, w)
    nc = n * c
    ho, wo = h // 2, w // 2

    # Lane-tile picker: whole (lane-dense) width when it fits, otherwise a
    # 512-lane tile with a cdiv grid + in-kernel masking of the remainder.
    wt = w if w <= 512 else 512
    mask_w = (w % wt) != 0
    nwt = pl.cdiv(w, wt)

    xf = x.reshape(nc, h, w)
    bw = jnp.asarray(_pool_w_matrix(wt), jnp.bfloat16)

    use_vpu_h = (wt % 128 == 0)          # sublane-pair sum wants vreg-aligned lanes
    if use_vpu_h:
        kernel = functools.partial(_pool2x2_kernel, w_total=w, wt=wt, mask_w=mask_w)
        in_specs = [
            pl.BlockSpec((1, h, wt), lambda i, wi: (i, 0, wi)),
            pl.BlockSpec((wt, wt // 2), lambda i, wi: (0, 0)),
        ]
        operands = (xf, bw)
    else:
        ah = jnp.asarray(_pool_h_matrix(h), jnp.bfloat16)
        kernel = _pool2x2_kernel_small
        in_specs = [
            pl.BlockSpec((1, h, wt), lambda i, wi: (i, 0, wi)),
            pl.BlockSpec((ho, h), lambda i, wi: (0, 0)),
            pl.BlockSpec((wt, wt // 2), lambda i, wi: (0, 0)),
        ]
        operands = (xf, ah, bw)

    out = pl.pallas_call(
        kernel,
        out_shape=jax.ShapeDtypeStruct((nc, ho, wo), out_dtype),
        grid=(nc, nwt),
        in_specs=in_specs,
        out_specs=pl.BlockSpec((1, ho, wt // 2), lambda i, wi: (i, 0, wi)),
        compiler_params=_compiler_params(("parallel", "parallel")),
    )(*operands)
    return out.reshape(n, c, ho, wo)


# ----------------------------------------------------------------------------
# 1x1 conv (NCHW, lane-dense spatial) — used for the small feature pyramid
# ----------------------------------------------------------------------------

def _conv1x1_kernel(x_ref, w_ref, b_ref, o_ref, *, relu):
    x = x_ref[0].astype(jnp.bfloat16)                        # (Ci, St)
    y = jnp.dot(w_ref[...], x, preferred_element_type=jnp.float32) + b_ref[...]
    if relu:
        y = jnp.maximum(y, 0.0)
    o_ref[0] = y.astype(o_ref.dtype)


def conv1x1(x, w, b, relu=False, out_dtype=jnp.bfloat16):
    """1x1 conv, NCHW in / NCHW out (spatial flattened onto the lane axis)."""
    n, ci, h, wd = x.shape
    co = w.shape[0]
    s = h * wd
    cap = _spatial_tile_cap()
    st = s if s <= cap else cap                              # full (lane-dense) or 128-multiple
    grid = (n, pl.cdiv(s, st))
    out = pl.pallas_call(
        functools.partial(_conv1x1_kernel, relu=relu),
        out_shape=jax.ShapeDtypeStruct((n, co, s), out_dtype),
        grid=grid,
        in_specs=[
            pl.BlockSpec((1, ci, st), lambda bi, si: (bi, 0, si)),
            pl.BlockSpec((co, ci), lambda bi, si: (0, 0)),
            pl.BlockSpec((co, 1), lambda bi, si: (0, 0)),
        ],
        out_specs=pl.BlockSpec((1, co, st), lambda bi, si: (bi, 0, si)),
        compiler_params=_compiler_params(("parallel", "parallel")),
    )(x.reshape(n, ci, s), w.astype(jnp.bfloat16), b.reshape(co, 1).astype(jnp.float32))
    return out.reshape(n, co, h, wd)


# ----------------------------------------------------------------------------
# Fused half-resolution chain (reuse() + ifnet + fusion, one pass over HBM)
# ----------------------------------------------------------------------------

def _chain_kernel(i0_ref, i1_ref, t_ref,
                  wfe_ref, bfe_ref, wfl_ref, bfl_ref, wme_ref, bme_ref,
                  wif_ref, bif_ref, wf1_ref, bf1_ref, wf2_ref, bf2_ref,
                  out_ref, f10_ref, f11_ref, fl01_ref, fl10_ref, met_ref):
    bf16 = jnp.bfloat16
    i0 = i0_ref[0]                                           # (3, St) bf16
    i1 = i1_ref[0]
    tt = t_ref[0]                                            # (1, St)

    def mm(w_ref_, xv):
        return jnp.dot(w_ref_[...], xv, preferred_element_type=jnp.float32)

    # fusionnet.feat_ext level 1 for both frames; (x-0.5)/0.5 is folded into
    # wfe / bfe by the wrapper (exact for a 1x1 conv).
    f1_0 = jnp.maximum(mm(wfe_ref, i0) + bfe_ref[...], 0.0)
    f1_1 = jnp.maximum(mm(wfe_ref, i1) + bfe_ref[...], 0.0)

    # GMFlow stand-in (scale == 1.0 path: inputs are the half-res images).
    flow01 = mm(wfl_ref, jnp.concatenate([i0, i1], axis=0)) + bfl_ref[...]
    flow10 = mm(wfl_ref, jnp.concatenate([i1, i0], axis=0)) + bfl_ref[...]
    fl01b = flow01.astype(bf16)
    fl10b = flow10.astype(bf16)

    # MetricNet stand-in (row 0 == metric0, row 1 == metric1).
    metric = mm(wme_ref, jnp.concatenate([i0, i1, fl01b, fl10b], axis=0)) + bme_ref[...]

    # IFNet stand-in.
    merged = mm(wif_ref, jnp.concatenate([i0, i1, tt], axis=0)) + bif_ref[...]

    # AnimeInterp fusion stand-in (channel order matches the fuse1 weights).
    cat = jnp.concatenate(
        [i0, i1, fl01b, fl10b, metric.astype(bf16), merged.astype(bf16), tt], axis=0)
    outh = mm(wf1_ref, cat) + bf1_ref[...]
    outh = outh + mm(
        wf2_ref, jnp.concatenate([f1_0.astype(bf16), f1_1.astype(bf16)], axis=0)
    ) + bf2_ref[...]

    out_ref[0] = outh.astype(out_ref.dtype)
    f10_ref[0] = f1_0.astype(f10_ref.dtype)
    f11_ref[0] = f1_1.astype(f11_ref.dtype)
    fl01_ref[0] = flow01.astype(fl01_ref.dtype)
    fl10_ref[0] = flow10.astype(fl10_ref.dtype)
    met_ref[0] = metric.astype(met_ref.dtype)


def halfres_chain(params, img0h, img1h, th):
    """One fused kernel for everything that runs at half resolution.

    img0h / img1h / th are loaded from HBM once per spatial tile; the GMFlow,
    MetricNet, IFNet and fusion stand-ins plus the level-1 feature extractor of
    both frames are evaluated in-register (these correspond to reuse() + the
    forward() body of the original module).
    """
    n, _, hh, wh = img0h.shape
    s = hh * wh
    cap = _spatial_tile_cap()
    st = s if s <= cap else cap
    grid = (n, pl.cdiv(s, st))

    w1, b1 = params["feat1"]
    # Fold (x - 0.5) / 0.5 into the first feature conv (exact):
    #   W @ (2x - 1) + b  ==  (2W) @ x + (b - W.sum(1))
    wfe = 2.0 * w1
    bfe = b1 - w1.sum(axis=1)
    pieces = [(wfe, bfe), params["flow"], params["metric"],
              params["ifnet"], params["fuse1"], params["fuse2"]]

    def wspec(arr):
        return pl.BlockSpec(arr.shape, lambda bi, si: (0, 0))

    def dspec(c):
        return pl.BlockSpec((1, c, st), lambda bi, si: (bi, 0, si))

    weights, w_specs = [], []
    for w_, b_ in pieces:
        wb = w_.astype(jnp.bfloat16)
        bb = b_.reshape(-1, 1).astype(jnp.float32)
        weights += [wb, bb]
        w_specs += [wspec(wb), wspec(bb)]

    data = [img0h.reshape(n, 3, s), img1h.reshape(n, 3, s), th.reshape(n, 1, s)]
    d_specs = [dspec(3), dspec(3), dspec(1)]

    out_shapes = (
        jax.ShapeDtypeStruct((n, 3, s), jnp.bfloat16),   # fused output (half res)
        jax.ShapeDtypeStruct((n, 8, s), jnp.bfloat16),   # feat level-1, frame 0
        jax.ShapeDtypeStruct((n, 8, s), jnp.bfloat16),   # feat level-1, frame 1
        jax.ShapeDtypeStruct((n, 2, s), jnp.bfloat16),   # flow01
        jax.ShapeDtypeStruct((n, 2, s), jnp.bfloat16),   # flow10
        jax.ShapeDtypeStruct((n, 2, s), jnp.bfloat16),   # metric0 / metric1
    )
    out_specs = (dspec(3), dspec(8), dspec(8), dspec(2), dspec(2), dspec(2))

    outs = pl.pallas_call(
        _chain_kernel,
        out_shape=out_shapes,
        grid=grid,
        in_specs=d_specs + w_specs,
        out_specs=out_specs,
        compiler_params=_compiler_params(("parallel", "parallel")),
    )(*data, *weights)

    rs = lambda a: a.reshape(n, a.shape[1], hh, wh)
    return tuple(rs(o) for o in outs)


# ----------------------------------------------------------------------------
# Final 2x bilinear upsample (single call at the end)
# ----------------------------------------------------------------------------

def _interp_matrix(n_in, n_out):
    """1-D weights of F.interpolate(mode='bilinear', align_corners=False)."""
    scale = n_in / n_out
    coords = (np.arange(n_out) + 0.5) * scale - 0.5
    i0 = np.floor(coords).astype(np.int64)
    frac = coords - i0
    i1 = i0 + 1
    i0c = np.clip(i0, 0, n_in - 1)
    i1c = np.clip(i1, 0, n_in - 1)
    m = np.zeros((n_out, n_in), dtype=np.float32)
    rows = np.arange(n_out)
    np.add.at(m, (rows, i0c), (1.0 - frac).astype(np.float32))
    np.add.at(m, (rows, i1c), frac.astype(np.float32))
    assert np.allclose(m.sum(axis=1), 1.0, atol=1e-5)
    return m


def _upsample_kernel(x_ref, a_ref, b_ref, o_ref):
    t = jnp.dot(x_ref[0], b_ref[...], preferred_element_type=jnp.float32)
    y = jnp.dot(a_ref[...], t.astype(jnp.bfloat16), preferred_element_type=jnp.float32)
    o_ref[0] = y.astype(o_ref.dtype)


def bilinear_upsample(x, out_h, out_w, out_dtype=jnp.float32):
    """F.interpolate to (out_h, out_w) via separable interpolation matmuls.

    Used exactly once (final 2x upsample back to full resolution).
    TODO(synk): a 2-tap even/odd phase split would make this memory-bound on
    v5e as well; on v6e/v7x it is already at the HBM-write floor.
    """
    n, c, h, w = x.shape
    nc = n * c
    a = jnp.asarray(_interp_matrix(h, out_h), jnp.bfloat16)         # (Ho, H)
    bm = jnp.asarray(_interp_matrix(w, out_w).T, jnp.bfloat16)      # (W, Wo)
    wt = out_w if out_w <= 1024 else 512
    grid = (nc, pl.cdiv(out_w, wt))
    out = pl.pallas_call(
        _upsample_kernel,
        out_shape=jax.ShapeDtypeStruct((nc, out_h, out_w), out_dtype),
        grid=grid,
        in_specs=[
            pl.BlockSpec((1, h, w), lambda i, wi: (i, 0, 0)),
            pl.BlockSpec((out_h, h), lambda i, wi: (0, 0)),
            pl.BlockSpec((w, wt), lambda i, wi: (0, wi)),
        ],
        out_specs=pl.BlockSpec((1, out_h, wt), lambda i, wi: (i, 0, wi)),
        compiler_params=_compiler_params(("parallel", "parallel")),
    )(x.reshape(nc, h, w).astype(jnp.bfloat16), a, bm)
    return out.reshape(n, c, out_h, out_w)


# ----------------------------------------------------------------------------
# Deterministic synthetic parameters (sub-network stand-ins)
# ----------------------------------------------------------------------------

def _dense(key, cin, cout, scale=0.1):
    w = jax.random.normal(key, (cout, cin), jnp.float32) * scale
    b = jnp.zeros((cout,), jnp.float32)
    return w, b


def init_params(key):
    keys = jax.random.split(key, 8)
    return {
        "feat1": _dense(keys[0], 3, 8),     # fusionnet.feat_ext level 1 (H/2)
        "feat2": _dense(keys[1], 8, 16),    # fusionnet.feat_ext level 2 (H/4)
        "feat3": _dense(keys[2], 16, 32),   # fusionnet.feat_ext level 3 (H/8)
        "flow": _dense(keys[3], 6, 2),      # GMFlow stand-in -> 2-ch flow
        "metric": _dense(keys[4], 10, 2),   # MetricNet stand-in -> 2 metrics
        "ifnet": _dense(keys[5], 7, 3),     # IFNet stand-in -> merged frame
        "fuse1": _dense(keys[6], 16, 3),    # AnimeInterp fusion stage 1
        "fuse2": _dense(keys[7], 16, 3),    # AnimeInterp feature mixing
    }


# ----------------------------------------------------------------------------
# GMFSS forward (scale = 1.0); reuse() is fused into the half-res chain kernel
# ----------------------------------------------------------------------------

def gmfss_forward(params, img0, img1, timestep):
    n, c, h, w = img0.shape

    # Half-resolution inputs: computed ONCE (shared by reuse() and forward()).
    img0h = pool2x2(img0)
    img1h = pool2x2(img1)
    th = pool2x2(timestep)

    # Fused half-res chain: flow01/flow10/metric (reuse outputs), level-1
    # features of both frames, the IFNet merge and the fusion output, all from
    # a single pass over img0h / img1h / th.
    outh, f1_0, f1_1, flow01, flow10, metric = halfres_chain(params, img0h, img1h, th)
    del flow01, flow10, metric   # reuse() outputs; not consumed further here

    # feat_ext pyramid levels 2 / 3 (part of reuse()'s returns in the original
    # module; computed for interface fidelity).
    # TODO(synk): the real multi-scale fusion + softmax-splatting warping of
    # AnimeInterp is not reproducible without its source.
    for f1 in (f1_0, f1_1):
        f2 = conv1x1(pool2x2(f1), *params["feat2"], relu=True)
        f3 = conv1x1(pool2x2(f2), *params["feat3"], relu=True)
        del f3

    # Back to full resolution.
    out = bilinear_upsample(outh, h, w, out_dtype=jnp.float32)
    return out


# ----------------------------------------------------------------------------

if __name__ == "__main__":
    key = jax.random.PRNGKey(0)
    k0, k1 = jax.random.split(key)
    N, C, H, W = 2, 3, 32, 32
    img0 = jax.random.uniform(k0, (N, C, H, W), jnp.float32)
    img1 = jax.random.uniform(k1, (N, C, H, W), jnp.float32)
    timestep = jnp.full((N, 1, H, W), 0.5, jnp.float32)

    params = init_params(jax.random.PRNGKey(42))

    out = gmfss_forward(params, img0, img1, timestep)
    out = jax.block_until_ready(out)
    assert out.shape == (N, 3, H, W), out.shape
    assert bool(jnp.all(jnp.isfinite(out)))
    print("KERNEL_OK")
</pallas_src>

<mosaic_0001>
module attributes {stable_mosaic.version = 11 : i64} {
  func.func @_pool2x2_kernel_small(%arg0: i32, %arg1: i32, %arg2: memref<1x32x32xf32, #tpu.memory_space<vmem>>, %arg3: memref<16x32xbf16, #tpu.memory_space<vmem>>, %arg4: memref<32x16xbf16, #tpu.memory_space<vmem>>, %arg5: memref<1x16x16xbf16, #tpu.memory_space<vmem>>) attributes {dimension_semantics = [#tpu.dimension_semantics<parallel>, #tpu.dimension_semantics<parallel>], iteration_bounds = array<i64: 6, 1>, scalar_prefetch = 0 : i64, scratch_operands = 0 : i64, tpu.core_type = #tpu.core_type<tc>, window_params = [{transform_indices = @transform_0, window_bounds = array<i64: 1, 32, 32>}, {pipeline_mode = #tpu.pipeline_mode<synchronous>, transform_indices = @transform_1, window_bounds = array<i64: 16, 32>}, {pipeline_mode = #tpu.pipeline_mode<synchronous>, transform_indices = @transform_2, window_bounds = array<i64: 32, 16>}, {transform_indices = @transform_3, window_bounds = array<i64: 1, 16, 16>}]} {
    %c0 = arith.constant 0 : index
    %c0_0 = arith.constant 0 : index
    %c0_1 = arith.constant 0 : index
    %0 = vector.load %arg2[%c0, %c0_0, %c0_1] : memref<1x32x32xf32, #tpu.memory_space<vmem>>, vector<1x32x32xf32>
    %1 = vector.shape_cast %0 : vector<1x32x32xf32> to vector<32x32xf32>
    %2 = arith.truncf %1 : vector<32x32xf32> to vector<32x32xbf16>
    %c0_2 = arith.constant 0 : index
    %c0_3 = arith.constant 0 : index
    %3 = vector.load %arg4[%c0_2, %c0_3] : memref<32x16xbf16, #tpu.memory_space<vmem>>, vector<32x16xbf16>
    %cst = arith.constant dense<0.000000e+00> : vector<32x16xf32>
    %4 = tpu.matmul %2, %3, %cst {dimension_numbers = #tpu.dot_dimension_numbers<[1], [0], [0], [1], [0, 0, 1, 1], [], []>} : vector<32x32xbf16>, vector<32x16xbf16>, vector<32x16xf32> -> vector<32x16xf32>
    %c0_4 = arith.constant 0 : index
    %c0_5 = arith.constant 0 : index
    %5 = vector.load %arg3[%c0_4, %c0_5] : memref<16x32xbf16, #tpu.memory_space<vmem>>, vector<16x32xbf16>
    %6 = arith.truncf %4 : vector<32x16xf32> to vector<32x16xbf16>
    %cst_6 = arith.constant dense<0.000000e+00> : vector<16x16xf32>
    %7 = tpu.matmul %5, %6, %cst_6 {dimension_numbers = #tpu.dot_dimension_numbers<[1], [0], [0], [1], [0, 0, 1, 1], [], []>} : vector<16x32xbf16>, vector<32x16xbf16>, vector<16x16xf32> -> vector<16x16xf32>
    %8 = arith.truncf %7 : vector<16x16xf32> to vector<16x16xbf16>
    %c0_7 = arith.constant 0 : index
    %c0_8 = arith.constant 0 : index
    %c0_9 = arith.constant 0 : index
    %9 = vector.load %arg5[%c0_7, %c0_8, %c0_9] : memref<1x16x16xbf16, #tpu.memory_space<vmem>>, vector<1x16x16xbf16>
    %10 = vector.shape_cast %9 : vector<1x16x16xbf16> to vector<16x16xbf16>
    %11 = vector.shape_cast %8 : vector<16x16xbf16> to vector<1x16x16xbf16>
    tpu.vector_store %arg5[%c0_7, %c0_8, %c0_9], %11 {strides = array<i32>} : memref<1x16x16xbf16, #tpu.memory_space<vmem>>, vector<1x16x16xbf16>,
    return
  }
  func.func @transform_0(%arg0: i32, %arg1: i32) -> (i32, i32, i32) {
    %c0_i32 = arith.constant 0 : i32
    %c0_i32_0 = arith.constant 0 : i32
    return %arg0, %c0_i32, %arg1 : i32, i32, i32
  }
  func.func @transform_1(%arg0: i32, %arg1: i32) -> (i32, i32) {
    %c0_i32 = arith.constant 0 : i32
    %c0_i32_0 = arith.constant 0 : i32
    %c0_i32_1 = arith.constant 0 : i32
    return %c0_i32, %c0_i32_0 : i32, i32
  }
  func.func @transform_2(%arg0: i32, %arg1: i32) -> (i32, i32) {
    %c0_i32 = arith.constant 0 : i32
    %c0_i32_0 = arith.constant 0 : i32
    %c0_i32_1 = arith.constant 0 : i32
    return %c0_i32, %c0_i32_0 : i32, i32
  }
  func.func @transform_3(%arg0: i32, %arg1: i32) -> (i32, i32, i32) {
    %c0_i32 = arith.constant 0 : i32
    %c0_i32_0 = arith.constant 0 : i32
    return %arg0, %c0_i32, %arg1 : i32, i32, i32
  }
}

</mosaic_0001>

<llo_original>
// kernel: tpu_custom_call.1
$region0: #{tpu_custom_call.1}
  #allocation0 [shape = 'u32[]', space=smem, size = 0x4, offset = 0x4, fixed_abs, tag = 'smem constant byte address 0x4 - core index']
  #allocation1 [shape = 'u32[144,128]{1,0:T(1,128)}', space=vmem, size = 0x12000, scoped, tag = 'internal scratch']
  %s0 = inlined_call_operand.hbm [shape: f32[6,32,32], index: 0, kind: input, shape index: {}]
  %s1 = inlined_call_operand.vmem [shape: bf16[16,32], index: 1, kind: input, shape index: {}]
  %s2 = inlined_call_operand.vmem [shape: bf16[32,16], index: 2, kind: input, shape index: {}]
  %s3 = inlined_call_operand.hbm [shape: bf16[6,16,16], index: 3, kind: output, shape index: {}]
  %s4 = sld [smem:[#allocation0]]
  $region49: #{tpu_custom_call.1} parent=0
    _
  %s6 = ssub.s32 1, %s4
  %s7 = scalar_select 0, %s6, %s4
  $region1: #{tpu_custom_call.1} parent=0
    #allocation2 [shape = 'u8[32768]{0}', space=vmem, size = 0x8000, scoped, tag = 'input window, operand 0']
    #allocation3 [shape = 's32[2]{0}', space=sflag, size = 0x8, scoped, tag = 'scoped memory for tpu_custom_call.1']
    #allocation4 [shape = 's32[2]{0}', space=sflag, size = 0x8, scoped, tag = 'scoped memory for tpu_custom_call.1']
    #allocation5 [shape = 'u8[8192]{0}', space=vmem, size = 0x2000, scoped, tag = 'output window, operand 0']
    %8 = vsyncpa [#allocation3], 0
    %s9 = scalar_lea.sflag [#allocation3], 1
    %10 = vsyncpa %s9, 0
    %11 = vsyncpa [#allocation4], 0
    %s12 = scalar_lea.sflag [#allocation4], 1
    %13 = vsyncpa %s12, 0
    loop: start=0, step=1, limit=8
    $region2: #{tpu_custom_call.1} parent=1 // loop_pre_header
      _
    $region3: #{tpu_custom_call.1} parent=1 // loop_header
      %s15 = sphi 0, %s19
      %p16 = scmp.ge.s32.totalorder %s15, 8
      %s22 = sphi 0, %s34
      %s23 = sphi 0, %s30
      %s24 = sphi 0, %s22
      %s25 = sphi 0, %s23
      %s26 = sphi 0, %s24
      %s27 = sphi 0, %s25
      %s39 = sphi 0, %s41
      %s42 = sphi 0, %s39
      %s43 = sphi 0, %s42
      %s59 = sphi 0, %s43
      %s63 = sphi 0, %s63
      %s65 = sphi 0, %s63
      %s66 = sphi 0, %s65
      %s80 = sphi 0, %s66
      %s84 = sphi 0, %s84
      %s86 = sphi 0, %s84
      %s87 = sphi 0, %s86
      %s101 = sphi 0, %s87
      %s109 = sphi 0, %s111
      %s112 = sphi 0, %s109
      %s113 = sphi 0, %s112
      %s129 = sphi 0, %s113
    $region4: #{tpu_custom_call.1} parent=1 // loop_header_branch
      %18 = sbr.rel (%p16) target = $region8
    $region5: #{tpu_custom_call.1} parent=1 // loop_body
      %s20 = ssub.s32 %s15, 1
      %s21 = ssub.s32 %s15, 2
      %s28 = sadd.s32 1, %s23
      %p29 = scmp.ge.s32.totalorder %s28, 1
      %s30 = scalar_select %p29, 0, %s28
      %s31 = sadd.s32 1, %s22
      %s32 = scalar_select %p29, %s31, %s22
      %p33 = scmp.ge.s32.totalorder %s32, 6
      %s34 = scalar_select %p33, 0, %s32
      %s35 = ssub.s32 %s22, %s34
      %s36 = ssub.s32 %s23, %s30
      %s37 = sor.u32 %s35, %s36
      %p38 = scmp.eq.s32.totalorder %s37, 0
      %s40 = sadd.s32 %s39, 1
      %s41 = scalar_select %p38, %s39, %s40
      %p44 = pneg %p38
      %p45 = scmp.eq.s32.totalorder %s15, 5
      %p46 = por %p44, %p45
      %p47 = scmp.ne.s32.totalorder %s39, %s42
      %p48 = scmp.eq.s32.totalorder %s15, 0
      %p49 = por %p47, %p48
      %p50 = scmp.ne.s32.totalorder %s39, %s42
      %p51 = scmp.eq.s32.totalorder %s20, 5
      %p52 = por %p50, %p51
      %p53 = scmp.ne.s32.totalorder %s42, %s43
      %p54 = scmp.eq.s32.totalorder %s20, 0
      %p55 = por %p53, %p54
      %p56 = scmp.ne.s32.totalorder %s42, %s43
      %p57 = scmp.eq.s32.totalorder %s21, 5
      %p58 = por %p56, %p57
      %p60 = scmp.ne.s32.totalorder %s43, %s59
      %p61 = scmp.eq.s32.totalorder %s21, 0
      %p62 = por %p60, %p61
      %s64 = sadd.s32 %s63, 1
      %p67 = scmp.eq.s32.totalorder %s15, 5
      %p68 = scmp.ne.s32.totalorder %s63, %s65
      %p69 = scmp.eq.s32.totalorder %s15, 0
      %p70 = por %p68, %p69
      %p71 = scmp.ne.s32.totalorder %s63, %s65
      %p72 = scmp.eq.s32.totalorder %s20, 5
      %p73 = por %p71, %p72
      %p74 = scmp.ne.s32.totalorder %s65, %s66
      %p75 = scmp.eq.s32.totalorder %s20, 0
      %p76 = por %p74, %p75
      %p77 = scmp.ne.s32.totalorder %s65, %s66
      %p78 = scmp.eq.s32.totalorder %s21, 5
      %p79 = por %p77, %p78
      %p81 = scmp.ne.s32.totalorder %s66, %s80
      %p82 = scmp.eq.s32.totalorder %s21, 0
      %p83 = por %p81, %p82
      %s85 = sadd.s32 %s84, 1
      %p88 = scmp.eq.s32.totalorder %s15, 5
      %p89 = scmp.ne.s32.totalorder %s84, %s86
      %p90 = scmp.eq.s32.totalorder %s15, 0
      %p91 = por %p89, %p90
      %p92 = scmp.ne.s32.totalorder %s84, %s86
      %p93 = scmp.eq.s32.totalorder %s20, 5
      %p94 = por %p92, %p93
      %p95 = scmp.ne.s32.totalorder %s86, %s87
      %p96 = scmp.eq.s32.totalorder %s20, 0
      %p97 = por %p95, %p96
      %p98 = scmp.ne.s32.totalorder %s86, %s87
      %p99 = scmp.eq.s32.totalorder %s21, 5
      %p100 = por %p98, %p99
      %p102 = scmp.ne.s32.totalorder %s87, %s101
      %p103 = scmp.eq.s32.totalorder %s21, 0
      %p104 = por %p102, %p103
      %s105 = ssub.s32 %s22, %s34
      %s106 = ssub.s32 %s23, %s30
      %s107 = sor.u32 %s105, %s106
      %p108 = scmp.eq.s32.totalorder %s107, 0
      %s110 = sadd.s32 %s109, 1
      %s111 = scalar_select %p108, %s109, %s110
      %p114 = pneg %p108
      %p115 = scmp.eq.s32.totalorder %s15, 5
      %p116 = por %p114, %p115
      %p117 = scmp.ne.s32.totalorder %s109, %s112
      %p118 = scmp.eq.s32.totalorder %s15, 0
      %p119 = por %p117, %p118
      %p120 = scmp.ne.s32.totalorder %s109, %s112
      %p121 = scmp.eq.s32.totalorder %s20, 5
      %p122 = por %p120, %p121
      %p123 = scmp.ne.s32.totalorder %s112, %s113
      %p124 = scmp.eq.s32.totalorder %s20, 0
      %p125 = por %p123, %p124
      %p126 = scmp.ne.s32.totalorder %s112, %s113
      %p127 = scmp.eq.s32.totalorder %s21, 5
      %p128 = por %p126, %p127
      %p130 = scmp.ne.s32.totalorder %s113, %s129
      %p131 = scmp.eq.s32.totalorder %s21, 0
      %p132 = por %p130, %p131
      %p133 = scmp.le.s32.totalorder 1, %s15
      %p134 = scmp.lt.s32.totalorder %s15, 7
      %p135 = pnand %p133, %p134
      %p136 = pneg %p135
      // Predicated region
      $region9: #{tpu_custom_call.1} parent=5 // pred_check
        _
      $region10: #{tpu_custom_call.1} parent=5 // pred_check_branch
        %138 = sbr.rel (%p135) target = $region12
      $region11: #{tpu_custom_call.1} parent=5 // pred_region
        %s139 = ssub.s32 %s15, 1
        // Predicated region
        $region13: #{tpu_custom_call.1} parent=11 // pred_check
          %p140 = pneg %p76
        $region14: #{tpu_custom_call.1} parent=11 // pred_check_branch
          %142 = sbr.rel (%p140) target = $region16
        $region15: #{tpu_custom_call.1} parent=11 // pred_region
          _
        $region16: #{tpu_custom_call.1} parent=11 // pred_fallthru
          _
        // Predicated region
        $region17: #{tpu_custom_call.1} parent=11 // pred_check
          %p143 = pneg %p97
        $region18: #{tpu_custom_call.1} parent=11 // pred_check_branch
          %145 = sbr.rel (%p143) target = $region20
        $region19: #{tpu_custom_call.1} parent=11 // pred_region
          _
        $region20: #{tpu_custom_call.1} parent=11 // pred_fallthru
          _
      $region12: #{tpu_custom_call.1} parent=5 // pred_fallthru
        _
      %p146 = scmp.lt.s32.totalorder %s15, 6
      // Predicated region
      $region21: #{tpu_custom_call.1} parent=5 // pred_check
        %p147 = pneg %p146
      $region22: #{tpu_custom_call.1} parent=5 // pred_check_branch
        %149 = sbr.rel (%p147) target = $region24
      $region23: #{tpu_custom_call.1} parent=5 // pred_region
        // Predicated region
        $region25: #{tpu_custom_call.1} parent=23 // pred_check
          %p150 = pneg %p49
        $region26: #{tpu_custom_call.1} parent=23 // pred_check_branch
          %152 = sbr.rel (%p150) target = $region28
        $region27: #{tpu_custom_call.1} parent=23 // pred_region
          %s153 = sand.u32 %s39, 1
          %s154 = scalar_lea.sflag [#allocation3], %s153
          %s155 = sand.u32 %s39, 1
          %s156 = smul.addr %s155, 32
          %s157 = scalar_lea.vmem [#allocation2], %s156
          %s159 = ssub.s32 512, 512
          %160 = vsyncadd %s154, %s159
          %s161 = smul.addr %s22, 4
          %s162 = sadd.s32 %s23, %s161
          %s163 = smul.addr %s162, 128
          %s164 = scalar_lea.hbm %s0, %s163
          %s165 = sshll.u32 %s157, 4
          %s166 = int_to_ptr.vmem [resolvable:$true] %s165
          %171 = dma.hbm_to_vmem [thread:$0]  %s164, 512, %s166, %s154, 128, 128, 8
        $region28: #{tpu_custom_call.1} parent=23 // pred_fallthru
          _
      $region24: #{tpu_custom_call.1} parent=5 // pred_fallthru
        _
      %p172 = scmp.le.s32.totalorder 1, %s15
      %p173 = scmp.lt.s32.totalorder %s15, 7
      %p174 = pnand %p172, %p173
      %p175 = pneg %p174
      // Predicated region
      $region29: #{tpu_custom_call.1} parent=5 // pred_check
        _
      $region30: #{tpu_custom_call.1} parent=5 // pred_check_branch
        %177 = sbr.rel (%p174) target = $region32
      $region31: #{tpu_custom_call.1} parent=5 // pred_region
        %s178 = ssub.s32 %s15, 1
        %s179 = sand.u32 %s42, 1
        %s180 = scalar_lea.sflag [#allocation3], %s179
        %s181 = sand.u32 %s42, 1
        %s182 = smul.addr %s181, 32
        %s183 = scalar_lea.vmem [#allocation2], %s182
        // Predicated region
        $region33: #{tpu_custom_call.1} parent=31 // pred_check
          %p184 = pneg %p55
        $region34: #{tpu_custom_call.1} parent=31 // pred_check_branch
          %186 = sbr.rel (%p184) target = $region36
        $region35: #{tpu_custom_call.1} parent=31 // pred_region
          %187 = dma.done %s180, 512
        $region36: #{tpu_custom_call.1} parent=31 // pred_fallthru
          _
        %s188 = sand.u32 %s42, 1
        %s189 = scalar_lea.sflag [#allocation3], %s188
        %s190 = sand.u32 %s42, 1
        %s191 = smul.addr %s190, 32
        %s192 = scalar_lea.vmem [#allocation2], %s191
        %p193 = pneg %p55
        %p194 = pneg %p52
        %p195 = pneg %p76
        %p196 = pneg %p73
        %p197 = pneg %p97
        %p198 = pneg %p94
        %p199 = pneg %p125
        %p200 = pneg %p122
        %s201 = sand.u32 %s112, 1
        %s202 = scalar_lea.sflag [#allocation4], %s201
        %s203 = sand.u32 %s112, 1
        %s204 = smul.addr %s203, 8
        %s205 = scalar_lea.vmem [#allocation5], %s204
        %v207 = vld [vmem:[%s183] sm:$0xff]
        %v208 = vld [vmem:[%s183 + $0x8] sm:$0xff]
        %v209 = vld [vmem:[%s183 + $0x10] sm:$0xff]
        %v210 = vld [vmem:[%s183 + $0x18] sm:$0xff]
        %v211 = vpack.c.bf16 %v208, %v207
        %v212 = vpack.c.bf16 %v210, %v209
        %v213 = vld [vmem:[%s2] sm:$0xf]
        %v214 = vld [vmem:[%s2 + $0x4] sm:$0xf]
        %v215 = vld [vmem:[%s2 + $0x8] sm:$0xf]
        %v216 = vld [vmem:[%s2 + $0xc] sm:$0xf]
        %v221 = vunpack.c.l.b16 %v213
        %v222 = vunpack.c.l.b16 %v214
        %v223 = vunpack.c.l.b16 %v215
        %v224 = vunpack.c.l.b16 %v216
        %v225 = vpack.c.b16 %v222, %v221
        %v226 = vpack.c.b16 %v224, %v223
        %vm229 = vcmask 261120
        %v231 = vsel %vm229, %v211, 0
        %v234 = vsel %vm229, %v212, 0
        %236 = vmatprep.subr.bf16.mxu0 0
        %237 = vmatpush1.bf16.msra.mxu0 %v225
        %238 = vmatprep.subr.bf16.mxu0 0
        %239 = vmatpush1.bf16.msra.mxu0 %v226
        %240 = vmatprep.subr.bf16.mxu0 0
        %241 = vmatpush1.bf16.msra.mxu0 0
        %242 = vmatprep.subr.bf16.mxu0 0
        %243 = vmatpush1.bf16.msra.mxu0 0
        %244 = vmatprep.subr.bf16.mxu0 0
        %245 = vmatpush1.bf16.msra.mxu0 0
        %246 = vmatprep.subr.bf16.mxu0 0
        %247 = vmatpush1.bf16.msra.mxu0 0
        %248 = vmatprep.subr.bf16.mxu0 0
        %249 = vmatpush1.bf16.msra.mxu0 0
        %250 = vmatprep.subr.bf16.mxu0 0
        %251 = vmatpush1.bf16.msra.mxu0 0
        %252 = vmatprep.subr.bf16.mxu0 0
        %253 = vmatpush1.bf16.msra.mxu0 0
        %254 = vmatprep.subr.bf16.mxu0 0
        %255 = vmatpush1.bf16.msra.mxu0 0
        %256 = vmatprep.subr.bf16.mxu0 0
        %257 = vmatpush1.bf16.msra.mxu0 0
        %258 = vmatprep.subr.bf16.mxu0 0
        %259 = vmatpush1.bf16.msra.mxu0 0
        %260 = vmatprep.subr.bf16.mxu0 0
        %261 = vmatpush1.bf16.msra.mxu0 0
        %262 = vmatprep.subr.bf16.mxu0 0
        %263 = vmatpush1.bf16.msra.mxu0 0
        %264 = vmatprep.subr.bf16.mxu0 0
        %265 = vmatpush1.bf16.msra.mxu0 0
        %266 = vmatprep.subr.bf16.mxu0 0
        %267 = vmatpush1.bf16.msra.mxu0 0
        %268 = vmatprep.mubr.bf16.mxu0 0
        %269 = vmatmul.mubr.bf16.gmra.mrb[0].mxu0 %v231
        %v270 = vpop.f32.mrb[0].mxu0
        %v271 = vadd.f32 0.0, %v270
        %v272 = vpop.f32.mrb[0].mxu0
        %v273 = vpop.f32.mrb[0].mxu0
        %v274 = vadd.f32 0.0, %v273
        %v275 = vpop.f32.mrb[0].mxu0
        %276 = vmatprep.mubr.bf16.mxu0 0
        %277 = vmatmul.mubr.bf16.gmra.mrb[0].mxu0 %v234
        %v278 = vpop.f32.mrb[0].mxu0
        %v279 = vadd.f32 0.0, %v278
        %v280 = vpop.f32.mrb[0].mxu0
        %v281 = vpop.f32.mrb[0].mxu0
        %v282 = vadd.f32 0.0, %v281
        %v283 = vpop.f32.mrb[0].mxu0
        %284 = vdwg.mxu0
        %v285 = vld [vmem:[%s1] sm:$0xf]
        %v286 = vld [vmem:[%s1 + $0x4] sm:$0xf]
        %v287 = vpack.c.bf16 %v274, %v271
        %v288 = vpack.c.bf16 %v282, %v279
        %v291 = vunpack.c.l.b16 %v285
        %v292 = vunpack.c.l.b16 %v286
        %v293 = vpack.c.b16 %v292, %v291
        %v295 = vsel %vm229, %v293, 0
        %297 = vmatprep.subr.bf16.mxu0 0
        %298 = vmatpush1.bf16.msra.mxu0 %v287
        %299 = vmatprep.subr.bf16.mxu0 0
        %300 = vmatpush1.bf16.msra.mxu0 %v288
        %301 = vmatprep.subr.bf16.mxu0 0
        %302 = vmatpush1.bf16.msra.mxu0 0
        %303 = vmatprep.subr.bf16.mxu0 0
        %304 = vmatpush1.bf16.msra.mxu0 0
        %305 = vmatprep.subr.bf16.mxu0 0
        %306 = vmatpush1.bf16.msra.mxu0 0
        %307 = vmatprep.subr.bf16.mxu0 0
        %308 = vmatpush1.bf16.msra.mxu0 0
        %309 = vmatprep.subr.bf16.mxu0 0
        %310 = vmatpush1.bf16.msra.mxu0 0
        %311 = vmatprep.subr.bf16.mxu0 0
        %312 = vmatpush1.bf16.msra.mxu0 0
        %313 = vmatprep.subr.bf16.mxu0 0
        %314 = vmatpush1.bf16.msra.mxu0 0
        %315 = vmatprep.subr.bf16.mxu0 0
        %316 = vmatpush1.bf16.msra.mxu0 0
        %317 = vmatprep.subr.bf16.mxu0 0
        %318 = vmatpush1.bf16.msra.mxu0 0
        %319 = vmatprep.subr.bf16.mxu0 0
        %320 = vmatpush1.bf16.msra.mxu0 0
        %321 = vmatprep.subr.bf16.mxu0 0
        %322 = vmatpush1.bf16.msra.mxu0 0
        %323 = vmatprep.subr.bf16.mxu0 0
        %324 = vmatpush1.bf16.msra.mxu0 0
        %325 = vmatprep.subr.bf16.mxu0 0
        %326 = vmatpush1.bf16.msra.mxu0 0
        %327 = vmatprep.subr.bf16.mxu0 0
        %328 = vmatpush1.bf16.msra.mxu0 0
        %329 = vmatprep.mubr.bf16.mxu0 0
        %330 = vmatmul.mubr.bf16.gmra.mrb[0].mxu0 %v295
        %v331 = vpop.f32.mrb[0].mxu0
        %v332 = vadd.f32 0.0, %v331
        %v333 = vpop.f32.mrb[0].mxu0
        %v334 = vpop.f32.mrb[0].mxu0
        %v335 = vadd.f32 0.0, %v334
        %v336 = vpop.f32.mrb[0].mxu0
        %337 = vdwg.mxu0
        %v338 = vpack.c.bf16 %v335, %v332
        %v340 = vunpack.c.l.b16 %v338
        %v341 = vunpack.c.h.b16 %v338
        %v342 = vpack.c.b16 %v340, %v340
        %v343 = vpack.c.b16 %v341, %v341
        %vm346 = vcmask 125952
        %347 = vst.msk [vmem:[%s205] sm:$0xf] %vm346, %v342
        %348 = vst.msk [vmem:[%s205 + $0x4] sm:$0xf] %vm346, %v343
        %s349 = sand.u32 %s112, 1
        %s350 = scalar_lea.sflag [#allocation4], %s349
        %s351 = sand.u32 %s112, 1
        %s352 = smul.addr %s351, 8
        %s353 = scalar_lea.vmem [#allocation5], %s352
        // Predicated region
        $region37: #{tpu_custom_call.1} parent=31 // pred_check
          %p354 = pneg %p122
        $region38: #{tpu_custom_call.1} parent=31 // pred_check_branch
          %356 = sbr.rel (%p354) target = $region40
        $region39: #{tpu_custom_call.1} parent=31 // pred_region
          %s358 = ssub.s32 128, 128
          %359 = vsyncadd %s350, %s358
          %s360 = smul.addr %s24, 2
          %s361 = sadd.s32 %s25, %s360
          %s362 = smul.addr %s361, 64
          %s363 = scalar_lea.hbm %s3, %s362
          %s364 = sshll.u32 %s353, 4
          %s365 = int_to_ptr.vmem [resolvable:$true] %s364
          %370 = dma.vmem_to_hbm [thread:$0]  %s365, 128, %s363, %s350, 64, 64, 4
        $region40: #{tpu_custom_call.1} parent=31 // pred_fallthru
          _
      $region32: #{tpu_custom_call.1} parent=5 // pred_fallthru
        _
      %p371 = scmp.le.s32.totalorder 2, %s15
      // Predicated region
      $region41: #{tpu_custom_call.1} parent=5 // pred_check
        %p372 = pneg %p371
      $region42: #{tpu_custom_call.1} parent=5 // pred_check_branch
        %374 = sbr.rel (%p372) target = $region44
      $region43: #{tpu_custom_call.1} parent=5 // pred_region
        %s375 = ssub.s32 %s15, 2
        // Predicated region
        $region45: #{tpu_custom_call.1} parent=43 // pred_check
          %p376 = pneg %p128
        $region46: #{tpu_custom_call.1} parent=43 // pred_check_branch
          %378 = sbr.rel (%p376) target = $region48
        $region47: #{tpu_custom_call.1} parent=43 // pred_region
          %s379 = sand.u32 %s113, 1
          %s380 = scalar_lea.sflag [#allocation4], %s379
          %s381 = sand.u32 %s113, 1
          %s382 = smul.addr %s381, 8
          %s383 = scalar_lea.vmem [#allocation5], %s382
          %384 = dma.done %s380, 128
        $region48: #{tpu_custom_call.1} parent=43 // pred_fallthru
          _
      $region44: #{tpu_custom_call.1} parent=5 // pred_fallthru
        _
    $region6: #{tpu_custom_call.1} parent=1 // loop_footer
      %s19 = sadd.s32 1, %s15
    $region7: #{tpu_custom_call.1} parent=1 // loop_footer_branch
      %14 = sbr.rel target = $region3
    $region8: #{tpu_custom_call.1} parent=1 // loop_exit
      _
    %385 = vsyncpa [#allocation3], 1
    %s386 = scalar_lea.sflag [#allocation3], 1
    %387 = vsyncpa %s386, 1
    %388 = vsyncpa [#allocation4], 1
    %s389 = scalar_lea.sflag [#allocation4], 1
    %390 = vsyncpa %s389, 1

</llo_original>
